<compile_context>
chip_gen: v6e
topology: v6e:2x2x1
jax: 0.10.0
libtpu: 0.0.40
codegen_flags: <defaults>
</compile_context>

<pallas_src>
import functools

import jax
import jax.numpy as jnp
from jax import lax
from jax.experimental import pallas as pl
from jax.experimental.pallas import tpu as pltpu


def _device_kind() -> str:
    try:
        return jax.devices()[0].device_kind.lower()
    except Exception:
        return ""


def _tensorcores_per_chip() -> int:
    kind = _device_kind()
    # Single-TensorCore generations.
    if "v5e" in kind or "v5 lite" in kind or "v6" in kind:
        return 1
    # Megacore / 2-TensorCore-per-chip generations.
    if "v4" in kind or "v5p" in kind or "v7" in kind:
        return 2
    return 1  # safe default: sequential loop, no wasted HBM traffic


def _vmem_budget_and_limit() -> tuple:
    kind = _device_kind()
    phys = 64 * 1024 * 1024 if "v7" in kind else 128 * 1024 * 1024
    # Leave headroom below physical VMEM for compiler temporaries etc.
    vmem_limit = min(96 * 1024 * 1024, phys * 3 // 4)   # 96 MiB (48 MiB on v7x)
    budget = min(24 * 1024 * 1024, vmem_limit // 3)     # 24 MiB (16 MiB on v7x)
    return budget, vmem_limit


def _dc_loss_kernel(o_ref, t_ref, num_ref, en_ref, acc_num, acc_en,
                    *, n_total, tn, tiles_per_core, needs_mask):
    k = pl.program_id(1)

    @pl.when(k == 0)
    def _():
        acc_num[...] = jnp.zeros_like(acc_num)
        acc_en[...] = jnp.zeros_like(acc_en)

    t = t_ref[...].astype(jnp.float32)              # (B, tn)
    o = o_ref[...].astype(jnp.float32)              # (B, tn)

    def accumulate(tv, ov):
        d = tv - ov
        colsum = jnp.sum(d, axis=0, keepdims=True)               # (1, tn)
        acc_num[...] += colsum * colsum                           # (sum_b d)^2 per col
        acc_en[...] += jnp.sum(tv * tv, axis=0, keepdims=True)    # sum_b t^2 per col

    if needs_mask:
        g = pl.program_id(0) * tiles_per_core + k                 # global tile index
        is_tail = (g + 1) * tn > n_total

        @pl.when(is_tail)
        def _():
            # Only the single straddling tile pays for the mask.
            col = lax.broadcasted_iota(jnp.int32, t.shape, 1)
            valid = (g * tn + col) < n_total
            accumulate(jnp.where(valid, t, 0.0), jnp.where(valid, o, 0.0))

        @pl.when(jnp.logical_not(is_tail))
        def _():
            accumulate(t, o)
    else:
        accumulate(t, o)

    @pl.when(k == pl.num_programs(1) - 1)
    def _():
        # Single expensive cross-lane reduce, once per core, lane-dense output.
        num_ref[...] = jnp.full(num_ref.shape, jnp.sum(acc_num[...]), jnp.float32)
        en_ref[...] = jnp.full(en_ref.shape, jnp.sum(acc_en[...]), jnp.float32)


def wright_dc_loss(output, target, epsilon=0.0):
    """Pallas implementation of WrightDCLoss.forward. Returns a scalar."""
    assert output.shape == target.shape
    # Flatten everything after the batch dim into one feature axis
    # (mean over dim 0 + full mean is invariant to this reshape).
    b = output.shape[0]
    out2d = output.reshape(b, -1)
    tgt2d = target.reshape(b, -1)
    n = out2d.shape[1]
    itemsize = out2d.dtype.itemsize

    budget, vmem_limit = _vmem_budget_and_limit()
    hw_cores = _tensorcores_per_chip()

    # Per lane column: 2 inputs x 2 pipeline buffers (native dtype)
    #                  + two (1, tn) f32 accumulators
    #                  + headroom for ~3 (B, tn) f32 compiler temporaries
    #                    (f32 upcasts of the two blocks + d).
    per_lane_bytes = b * (4 * itemsize + 12) + 8

    if n < 128:
        tn = n                                       # full lane dim (always legal)
    else:
        cap = max(128, (budget // per_lane_bytes) // 128 * 128)
        tn = min(cap, 4096, (n // 128) * 128)
        # Prefer >= ~4 grid steps (so double-buffering overlaps DMA with
        # compute), but never shrink lane tiles below 512 (high-roofline regime).
        desired_max = max(512, (n // 4 // 128) * 128)
        tn = max(128, min(tn, desired_max))

    total_tiles = -(-n // tn)

    # Exact 2-way split across TensorCores only when it divides evenly; try a
    # small tn rebalance first, otherwise fall back to a single core (just a
    # sequential loop -- no clamped overflow tile, no wasted HBM traffic).
    if hw_cores >= 2 and total_tiles >= 2 and total_tiles % 2 == 1 and tn > 512:
        for cand in range(tn - 128, 511, -128):
            cand_tiles = -(-n // cand)
            if cand_tiles % 2 == 0:
                tn, total_tiles = cand, cand_tiles
                break
    num_cores = 2 if (hw_cores >= 2 and total_tiles >= 2
                      and total_tiles % 2 == 0) else 1
    tiles_per_core = total_tiles // num_cores
    needs_mask = (total_tiles * tn) != n

    kernel = functools.partial(
        _dc_loss_kernel, n_total=n, tn=tn,
        tiles_per_core=tiles_per_core, needs_mask=needs_mask)

    def in_map(i, k):
        return (0, i * tiles_per_core + k)

    out_num, out_en = pl.pallas_call(
        kernel,
        out_shape=(jax.ShapeDtypeStruct((num_cores, 1, 128), jnp.float32),
                   jax.ShapeDtypeStruct((num_cores, 1, 128), jnp.float32)),
        grid_spec=pltpu.PrefetchScalarGridSpec(
            num_scalar_prefetch=0,
            grid=(num_cores, tiles_per_core),
            in_specs=[
                pl.BlockSpec((b, tn), in_map),
                pl.BlockSpec((b, tn), in_map),
            ],
            out_specs=(
                pl.BlockSpec((1, 1, 128), lambda i, k: (i, 0, 0)),
                pl.BlockSpec((1, 1, 128), lambda i, k: (i, 0, 0)),
            ),
            scratch_shapes=[
                pltpu.VMEM((1, tn), jnp.float32),   # per-column (sum_b d)^2
                pltpu.VMEM((1, tn), jnp.float32),   # per-column sum_b t^2
            ],
        ),
        compiler_params=pltpu.CompilerParams(
            dimension_semantics=("parallel", "arbitrary"),
            vmem_limit_bytes=vmem_limit),
    )(out2d, tgt2d)

    # Tiny final combine in plain JAX (sums over num_cores partials).
    num_total = jnp.sum(out_num[:, 0, 0])
    en_total = jnp.sum(out_en[:, 0, 0])
    loss_num = num_total / jnp.float32(b * b * n)   # (sum_b d)^2 / B^2, avg over N
    energy = en_total / jnp.float32(b * n) + jnp.float32(epsilon)
    return loss_num / energy


def _reference(output, target, epsilon=0.0):
    output = output.astype(jnp.float32)
    target = target.astype(jnp.float32)
    loss = jnp.mean((jnp.mean(target, 0) - jnp.mean(output, 0)) ** 2)
    energy = jnp.mean(target ** 2) + epsilon
    return loss / energy


if __name__ == "__main__":
    key = jax.random.PRNGKey(0)
    # aligned single-tile, non-128-multiple (masked tail), 3-D input (flattened),
    # multi-step pipeline (4 x 512 tiles / 2-core split on multi-TC chips).
    cases = [
        ((8, 256), jnp.float32, 1e-5),
        ((4, 200), jnp.float32, 1e-5),
        ((2, 4, 80), jnp.float32, 1e-5),
        ((8, 2048), jnp.float32, 1e-5),
        ((4, 640), jnp.bfloat16, 1e-4),   # native-dtype (bf16) input path
    ]
    for shape, dtype, rtol in cases:
        key, k1, k2 = jax.random.split(key, 3)
        output = jax.random.normal(k1, shape, dtype=jnp.float32).astype(dtype)
        target = jax.random.normal(k2, shape, dtype=jnp.float32).astype(dtype)

        loss = wright_dc_loss(output, target)
        loss = jax.block_until_ready(loss)

        ref = _reference(output, target)
        assert jnp.allclose(loss, ref, rtol=rtol, atol=1e-6), (shape, loss, ref)

    print("KERNEL_OK")
</pallas_src>

<mosaic_0001>
module attributes {stable_mosaic.version = 11 : i64} {
  func.func @_dc_loss_kernel(%arg0: i32, %arg1: i32, %arg2: memref<8x256xf32, #tpu.memory_space<vmem>>, %arg3: memref<8x256xf32, #tpu.memory_space<vmem>>, %arg4: memref<1x1x128xf32, #tpu.memory_space<vmem>>, %arg5: memref<1x1x128xf32, #tpu.memory_space<vmem>>, %arg6: memref<1x256xf32, #tpu.memory_space<vmem>>, %arg7: memref<1x256xf32, #tpu.memory_space<vmem>>) attributes {dimension_semantics = [#tpu.dimension_semantics<parallel>, #tpu.dimension_semantics<arbitrary>], iteration_bounds = array<i64: 1, 1>, scalar_prefetch = 0 : i64, scratch_operands = 2 : i64, tpu.core_type = #tpu.core_type<tc>, window_params = [{transform_indices = @transform_0, window_bounds = array<i64: 8, 256>}, {transform_indices = @transform_1, window_bounds = array<i64: 8, 256>}, {transform_indices = @transform_2, window_bounds = array<i64: 1, 1, 128>}, {transform_indices = @transform_3, window_bounds = array<i64: 1, 1, 128>}]} {
    %c0_i32 = arith.constant 0 : i32
    %0 = arith.cmpi eq, %arg1, %c0_i32 : i32
    %1 = arith.extui %0 : i1 to i32
    %c0_i32_0 = arith.constant 0 : i32
    %2 = arith.cmpi ne, %1, %c0_i32_0 : i32
    scf.if %2 {
      %cst_15 = arith.constant 0.000000e+00 : f32
      %21 = vector.broadcast %cst_15 : f32 to vector<1x256xf32>
      %c0_16 = arith.constant 0 : index
      %c0_17 = arith.constant 0 : index
      %22 = vector.load %arg6[%c0_16, %c0_17] : memref<1x256xf32, #tpu.memory_space<vmem>>, vector<1x256xf32>
      tpu.vector_store %arg6[%c0_16, %c0_17], %21 {strides = array<i32>} : memref<1x256xf32, #tpu.memory_space<vmem>>, vector<1x256xf32>,
      %cst_18 = arith.constant 0.000000e+00 : f32
      %23 = vector.broadcast %cst_18 : f32 to vector<1x256xf32>
      %c0_19 = arith.constant 0 : index
      %c0_20 = arith.constant 0 : index
      %24 = vector.load %arg7[%c0_19, %c0_20] : memref<1x256xf32, #tpu.memory_space<vmem>>, vector<1x256xf32>
      tpu.vector_store %arg7[%c0_19, %c0_20], %23 {strides = array<i32>} : memref<1x256xf32, #tpu.memory_space<vmem>>, vector<1x256xf32>,
    } else {
    }
    %c0 = arith.constant 0 : index
    %c0_1 = arith.constant 0 : index
    %3 = vector.load %arg3[%c0, %c0_1] : memref<8x256xf32, #tpu.memory_space<vmem>>, vector<8x256xf32>
    %c0_2 = arith.constant 0 : index
    %c0_3 = arith.constant 0 : index
    %4 = vector.load %arg2[%c0_2, %c0_3] : memref<8x256xf32, #tpu.memory_space<vmem>>, vector<8x256xf32>
    %5 = arith.subf %3, %4 : vector<8x256xf32>
    %cst = arith.constant dense<0.000000e+00> : vector<256xf32>
    %6 = vector.multi_reduction <add>, %5, %cst [0] : vector<8x256xf32> to vector<256xf32>
    %7 = vector.shape_cast %6 : vector<256xf32> to vector<1x256xf32>
    %c0_4 = arith.constant 0 : index
    %c0_5 = arith.constant 0 : index
    %8 = vector.load %arg6[%c0_4, %c0_5] : memref<1x256xf32, #tpu.memory_space<vmem>>, vector<1x256xf32>
    %9 = arith.mulf %7, %7 : vector<1x256xf32>
    %10 = arith.addf %8, %9 : vector<1x256xf32>
    %c0_6 = arith.constant 0 : index
    %c0_7 = arith.constant 0 : index
    %11 = vector.load %arg6[%c0_6, %c0_7] : memref<1x256xf32, #tpu.memory_space<vmem>>, vector<1x256xf32>
    tpu.vector_store %arg6[%c0_6, %c0_7], %10 {strides = array<i32>} : memref<1x256xf32, #tpu.memory_space<vmem>>, vector<1x256xf32>,
    %c0_8 = arith.constant 0 : index
    %c0_9 = arith.constant 0 : index
    %12 = vector.load %arg7[%c0_8, %c0_9] : memref<1x256xf32, #tpu.memory_space<vmem>>, vector<1x256xf32>
    %13 = arith.mulf %3, %3 : vector<8x256xf32>
    %cst_10 = arith.constant dense<0.000000e+00> : vector<256xf32>
    %14 = vector.multi_reduction <add>, %13, %cst_10 [0] : vector<8x256xf32> to vector<256xf32>
    %15 = vector.shape_cast %14 : vector<256xf32> to vector<1x256xf32>
    %16 = arith.addf %12, %15 : vector<1x256xf32>
    %c0_11 = arith.constant 0 : index
    %c0_12 = arith.constant 0 : index
    %17 = vector.load %arg7[%c0_11, %c0_12] : memref<1x256xf32, #tpu.memory_space<vmem>>, vector<1x256xf32>
    tpu.vector_store %arg7[%c0_11, %c0_12], %16 {strides = array<i32>} : memref<1x256xf32, #tpu.memory_space<vmem>>, vector<1x256xf32>,
    %c0_i32_13 = arith.constant 0 : i32
    %18 = arith.cmpi eq, %arg1, %c0_i32_13 : i32
    %19 = arith.extui %18 : i1 to i32
    %c0_i32_14 = arith.constant 0 : i32
    %20 = arith.cmpi ne, %19, %c0_i32_14 : i32
    scf.if %20 {
      %c0_15 = arith.constant 0 : index
      %c0_16 = arith.constant 0 : index
      %21 = vector.load %arg6[%c0_15, %c0_16] : memref<1x256xf32, #tpu.memory_space<vmem>>, vector<1x256xf32>
      %22 = vector.shape_cast %21 : vector<1x256xf32> to vector<1x1x256xf32>
      %cst_17 = arith.constant dense<0.000000e+00> : vector<1xf32>
      %23 = vector.multi_reduction <add>, %22, %cst_17 [1, 2] : vector<1x1x256xf32> to vector<1xf32>
      %24 = vector.shape_cast %23 : vector<1xf32> to vector<1x1x1xf32>
      %25 = vector.extract %24[0, 0, 0] : f32 from vector<1x1x1xf32>
      %26 = vector.broadcast %25 : f32 to vector<1x1x128xf32>
      %c0_18 = arith.constant 0 : index
      %c0_19 = arith.constant 0 : index
      %c0_20 = arith.constant 0 : index
      %27 = vector.load %arg4[%c0_18, %c0_19, %c0_20] : memref<1x1x128xf32, #tpu.memory_space<vmem>>, vector<1x1x128xf32>
      tpu.vector_store %arg4[%c0_18, %c0_19, %c0_20], %26 {strides = array<i32>} : memref<1x1x128xf32, #tpu.memory_space<vmem>>, vector<1x1x128xf32>,
      %c0_21 = arith.constant 0 : index
      %c0_22 = arith.constant 0 : index
      %28 = vector.load %arg7[%c0_21, %c0_22] : memref<1x256xf32, #tpu.memory_space<vmem>>, vector<1x256xf32>
      %29 = vector.shape_cast %28 : vector<1x256xf32> to vector<1x1x256xf32>
      %cst_23 = arith.constant dense<0.000000e+00> : vector<1xf32>
      %30 = vector.multi_reduction <add>, %29, %cst_23 [1, 2] : vector<1x1x256xf32> to vector<1xf32>
      %31 = vector.shape_cast %30 : vector<1xf32> to vector<1x1x1xf32>
      %32 = vector.extract %31[0, 0, 0] : f32 from vector<1x1x1xf32>
      %33 = vector.broadcast %32 : f32 to vector<1x1x128xf32>
      %c0_24 = arith.constant 0 : index
      %c0_25 = arith.constant 0 : index
      %c0_26 = arith.constant 0 : index
      %34 = vector.load %arg5[%c0_24, %c0_25, %c0_26] : memref<1x1x128xf32, #tpu.memory_space<vmem>>, vector<1x1x128xf32>
      tpu.vector_store %arg5[%c0_24, %c0_25, %c0_26], %33 {strides = array<i32>} : memref<1x1x128xf32, #tpu.memory_space<vmem>>, vector<1x1x128xf32>,
    } else {
    }
    return
  }
  func.func @transform_0(%arg0: i32, %arg1: i32) -> (i32, i32) {
    %c1_i32 = arith.constant 1 : i32
    %0 = arith.muli %arg0, %c1_i32 : i32
    %1 = arith.addi %0, %arg1 : i32
    %c0_i32 = arith.constant 0 : i32
    %c0_i32_0 = arith.constant 0 : i32
    return %c0_i32, %1 : i32, i32
  }
  func.func @transform_1(%arg0: i32, %arg1: i32) -> (i32, i32) {
    %c1_i32 = arith.constant 1 : i32
    %0 = arith.muli %arg0, %c1_i32 : i32
    %1 = arith.addi %0, %arg1 : i32
    %c0_i32 = arith.constant 0 : i32
    %c0_i32_0 = arith.constant 0 : i32
    return %c0_i32, %1 : i32, i32
  }
  func.func @transform_2(%arg0: i32, %arg1: i32) -> (i32, i32, i32) {
    %c0_i32 = arith.constant 0 : i32
    %c0_i32_0 = arith.constant 0 : i32
    %c0_i32_1 = arith.constant 0 : i32
    return %arg0, %c0_i32, %c0_i32_0 : i32, i32, i32
  }
  func.func @transform_3(%arg0: i32, %arg1: i32) -> (i32, i32, i32) {
    %c0_i32 = arith.constant 0 : i32
    %c0_i32_0 = arith.constant 0 : i32
    %c0_i32_1 = arith.constant 0 : i32
    return %arg0, %c0_i32, %c0_i32_0 : i32, i32, i32
  }
}

</mosaic_0001>

<llo_original>
// kernel: tpu_custom_call.1
$region0: #{tpu_custom_call.1}
  #allocation0 [shape = 'u32[]', space=smem, size = 0x4, offset = 0x4, fixed_abs, tag = 'smem constant byte address 0x4 - core index']
  #allocation1 [shape = 'u32[144,128]{1,0:T(1,128)}', space=vmem, size = 0x12000, scoped, tag = 'internal scratch']
  #allocation2 [shape = 'f32[1,256]{1,0:T(1,128)}', space=vmem, size = 0x400, scoped, tag = 'scratch operand']
  #allocation3 [shape = 'f32[1,256]{1,0:T(1,128)}', space=vmem, size = 0x400, scoped, tag = 'scratch operand']
  %s0 = inlined_call_operand.hbm [shape: f32[8,256], index: 0, kind: input, shape index: {}]
  %s1 = inlined_call_operand.hbm [shape: f32[8,256], index: 1, kind: input, shape index: {}]
  %s2 = inlined_call_operand.hbm [shape: f32[1,1,128], index: 2, kind: output, shape index: {0}]
  %s3 = inlined_call_operand.hbm [shape: f32[1,1,128], index: 3, kind: output, shape index: {1}]
  %4 = xla_tuple %s2, %s3
  %s5 = sld [smem:[#allocation0]]
  $region42: #{tpu_custom_call.1} parent=0
    _
  %s7 = ssub.s32 1, %s5
  %s8 = scalar_select 0, %s7, %s5
  $region1: #{tpu_custom_call.1} parent=0
    #allocation4 [shape = 'u8[8192]{0}', space=vmem, size = 0x2000, scoped, tag = 'input window, operand 0, single buffered']
    #allocation5 [shape = 's32[1]{0}', space=sflag, size = 0x4, scoped, tag = 'scoped memory for tpu_custom_call.1']
    #allocation6 [shape = 's32[1]{0}', space=sflag, size = 0x4, scoped, tag = 'scoped memory for tpu_custom_call.1']
    #allocation7 [shape = 'u8[8192]{0}', space=vmem, size = 0x2000, scoped, tag = 'input window, operand 1, single buffered']
    #allocation8 [shape = 's32[1]{0}', space=sflag, size = 0x4, scoped, tag = 'scoped memory for tpu_custom_call.1']
    #allocation9 [shape = 'u8[512]{0}', space=vmem, size = 0x400, scoped, tag = 'output window, operand 0, single buffered']
    #allocation10 [shape = 'u8[512]{0}', space=vmem, size = 0x400, scoped, tag = 'output window, operand 1, single buffered']
    #allocation11 [shape = 's32[1]{0}', space=sflag, size = 0x4, scoped, tag = 'scoped memory for tpu_custom_call.1']
    %9 = vsyncpa [#allocation5], 0
    %10 = vsyncpa [#allocation8], 0
    %11 = vsyncpa [#allocation6], 0
    %12 = vsyncpa [#allocation11], 0
    // Predicated region
    $region2: #{tpu_custom_call.1} parent=1 // pred_check
      _
    $region3: #{tpu_custom_call.1} parent=1 // pred_check_branch
      %14 = sbr.rel (0) target = $region5
    $region4: #{tpu_custom_call.1} parent=1 // pred_region
      %s15 = sadd.s32 0, 0
      %s16 = smul.u32 2, %s15
      %s18 = ssub.s32 256, 256
      %19 = vsyncadd [#allocation5], %s18
      %s20 = smul.addr %s16, 128
      %s21 = scalar_lea.hbm %s0, %s20
      %s23 = sshll.u32 [#allocation4], 4
      %s24 = int_to_ptr.vmem [resolvable:$true] %s23
      %26 = dma.hbm_to_vmem [thread:$0]  %s21, 256, %s24, [#allocation5]
    $region5: #{tpu_custom_call.1} parent=1 // pred_fallthru
      _
    // Predicated region
    $region6: #{tpu_custom_call.1} parent=1 // pred_check
      _
    $region7: #{tpu_custom_call.1} parent=1 // pred_check_branch
      %28 = sbr.rel (0) target = $region9
    $region8: #{tpu_custom_call.1} parent=1 // pred_region
      %s29 = sadd.s32 0, 0
      %s30 = smul.u32 2, %s29
      %s32 = ssub.s32 256, 256
      %33 = vsyncadd [#allocation8], %s32
      %s34 = smul.addr %s30, 128
      %s35 = scalar_lea.hbm %s1, %s34
      %s37 = sshll.u32 [#allocation7], 4
      %s38 = int_to_ptr.vmem [resolvable:$true] %s37
      %40 = dma.hbm_to_vmem [thread:$0]  %s35, 256, %s38, [#allocation8]
    $region9: #{tpu_custom_call.1} parent=1 // pred_fallthru
      _
    // Predicated region
    $region10: #{tpu_custom_call.1} parent=1 // pred_check
      _
    $region11: #{tpu_custom_call.1} parent=1 // pred_check_branch
      %42 = sbr.rel (0) target = $region13
    $region12: #{tpu_custom_call.1} parent=1 // pred_region
      %43 = dma.done [#allocation5], 256
    $region13: #{tpu_custom_call.1} parent=1 // pred_fallthru
      _
    // Predicated region
    $region14: #{tpu_custom_call.1} parent=1 // pred_check
      _
    $region15: #{tpu_custom_call.1} parent=1 // pred_check_branch
      %45 = sbr.rel (0) target = $region17
    $region16: #{tpu_custom_call.1} parent=1 // pred_region
      %46 = dma.done [#allocation8], 256
    $region17: #{tpu_custom_call.1} parent=1 // pred_fallthru
      _
    %s47 = sadd.s32 0, 0
    %s48 = smul.u32 2, %s47
    %s49 = sadd.s32 0, 0
    %s50 = smul.u32 2, %s49
    %p51 = scmp.eq.s32.totalorder 0, 0
    // Predicated region
    $region18: #{tpu_custom_call.1} parent=1 // pred_check
      %p52 = pneg %p51
    $region19: #{tpu_custom_call.1} parent=1 // pred_check_branch
      %54 = sbr.rel (%p52) target = $region21
    $region20: #{tpu_custom_call.1} parent=1 // pred_region
      %v55 = vlaneseq
      %vm56 = vcmp.ge.s32.totalorder %v55, 0
      %vm57 = vcmp.lt.s32.totalorder %v55, 256
      %vm58 = vmand %vm56, %vm57
      %59 = vst.msk [vmem:[#allocation2] sm:$0x3] %vm58, 0.0
      %60 = vst.msk [vmem:[#allocation3] sm:$0x3] %vm58, 0.0
    $region21: #{tpu_custom_call.1} parent=1 // pred_fallthru
      _
    %v61 = vld [vmem:[#allocation7] sm:$0xff]
    %v62 = vld [vmem:[#allocation7 + $0x8] sm:$0xff]
    %v63 = vld [vmem:[#allocation4] sm:$0xff]
    %v64 = vld [vmem:[#allocation4 + $0x8] sm:$0xff]
    %v65 = vsub.f32 %v61, %v63
    %v66 = vsub.f32 %v62, %v64
    %v67 = vrot.slane %v65, 4
    %v68 = vadd.f32 %v65, %v67
    %v69 = vrot.slane %v68, 2
    %v70 = vadd.f32 %v68, %v69
    %v71 = vrot.slane %v70, 1
    %v72 = vadd.f32 %v70, %v71
    %v73 = vrot.slane %v66, 4
    %v74 = vadd.f32 %v66, %v73
    %v75 = vrot.slane %v74, 2
    %v76 = vadd.f32 %v74, %v75
    %v77 = vrot.slane %v76, 1
    %v78 = vadd.f32 %v76, %v77
    %v79 = vld [vmem:[#allocation2] sm:$0x3]
    %v80 = vmul.f32 %v72, %v72
    %v81 = vmul.f32 %v78, %v78
    %v84 = vcombine.low %v80, %v81
    %v86 = vunpack.c.l.s4 1966171168
    %v87 = vunpack.c.0.s8 %v86
    %v88 = vlaneseq
    %v89 = vshrl.u32 %v88, 7
    %v90 = vsub.s32 %v87, %v89
    %v91 = vrot.slane %v84, %v90
    %v93 = vunpack.c.l.s4 1966171168
    %v94 = vunpack.c.0.s8 %v93
    %v95 = vlaneseq
    %v96 = vshrl.u32 %v95, 7
    %v97 = vsub.s32 %v94, %v96
    %v98 = vrot.slane %v91, %v97
    %v100 = vadd.f32 %v79, %v98
    %v101 = vlaneseq
    %vm102 = vcmp.ge.s32.totalorder %v101, 0
    %vm103 = vcmp.lt.s32.totalorder %v101, 256
    %vm104 = vmand %vm102, %vm103
    %105 = vst.msk [vmem:[#allocation2] sm:$0x3] %vm104, %v100
    %v106 = vld [vmem:[#allocation3] sm:$0x3]
    %v107 = vmul.f32 %v61, %v61
    %v108 = vmul.f32 %v62, %v62
    %v109 = vrot.slane %v107, 4
    %v110 = vadd.f32 %v107, %v109
    %v111 = vrot.slane %v110, 2
    %v112 = vadd.f32 %v110, %v111
    %v113 = vrot.slane %v112, 1
    %v114 = vadd.f32 %v112, %v113
    %v115 = vrot.slane %v108, 4
    %v116 = vadd.f32 %v108, %v115
    %v117 = vrot.slane %v116, 2
    %v118 = vadd.f32 %v116, %v117
    %v119 = vrot.slane %v118, 1
    %v120 = vadd.f32 %v118, %v119
    %v123 = vcombine.low %v114, %v120
    %v125 = vunpack.c.l.s4 1966171168
    %v126 = vunpack.c.0.s8 %v125
    %v127 = vlaneseq
    %v128 = vshrl.u32 %v127, 7
    %v129 = vsub.s32 %v126, %v128
    %v130 = vrot.slane %v123, %v129
    %v132 = vunpack.c.l.s4 1966171168
    %v133 = vunpack.c.0.s8 %v132
    %v134 = vlaneseq
    %v135 = vshrl.u32 %v134, 7
    %v136 = vsub.s32 %v133, %v135
    %v137 = vrot.slane %v130, %v136
    %v139 = vadd.f32 %v106, %v137
    %140 = vst.msk [vmem:[#allocation3] sm:$0x3] %vm104, %v139
    // Predicated region
    $region22: #{tpu_custom_call.1} parent=1 // pred_check
      %p141 = pneg %p51
    $region23: #{tpu_custom_call.1} parent=1 // pred_check_branch
      %143 = sbr.rel (%p141) target = $region25
    $region24: #{tpu_custom_call.1} parent=1 // pred_region
      %v144 = vld [vmem:[#allocation2] sm:$0x3]
      %v146 = vlaneseq
      %v147 = vshrl.u32 %v146, 7
      %v148 = vsub.s32 0, %v147
      %v149 = vrot.slane %v144, %v148
      %v150 = vlaneseq
      %v151 = vshrl.u32 %v150, 7
      %v152 = vsub.s32 1, %v151
      %v153 = vrot.slane %v144, %v152
      %vm156 = vcmask 1040384
      %v157 = vsel %vm156, %v149, 0.0
      %v158 = vsel %vm156, %v153, 0.0
      %v159 = vadd.f32 %v157, %v158
      %160 = vadd.xlane.f32.xlu0 %v159
      %v161 = vpop.xlane.xlu0 %160
      %v162 = vrot.slane %v161, 4
      %v163 = vadd.f32 %v161, %v162
      %v164 = vrot.slane %v163, 2
      %v165 = vadd.f32 %v163, %v164
      %v166 = vrot.slane %v165, 1
      %v167 = vadd.f32 %v165, %v166
      %s168 = vtos %v167
      %v169 = vstv %s168
      %170 = vst [vmem:[#allocation9] sm:$0x1] %v169
      %v171 = vld [vmem:[#allocation3] sm:$0x3]
      %v173 = vlaneseq
      %v174 = vshrl.u32 %v173, 7
      %v175 = vsub.s32 0, %v174
      %v176 = vrot.slane %v171, %v175
      %v177 = vlaneseq
      %v178 = vshrl.u32 %v177, 7
      %v179 = vsub.s32 1, %v178
      %v180 = vrot.slane %v171, %v179
      %v183 = vsel %vm156, %v176, 0.0
      %v184 = vsel %vm156, %v180, 0.0
      %v185 = vadd.f32 %v183, %v184
      %186 = vadd.xlane.f32.xlu0 %v185
      %v187 = vpop.xlane.xlu0 %186
      %v188 = vrot.slane %v187, 4
      %v189 = vadd.f32 %v187, %v188
      %v190 = vrot.slane %v189, 2
      %v191 = vadd.f32 %v189, %v190
      %v192 = vrot.slane %v191, 1
      %v193 = vadd.f32 %v191, %v192
      %s194 = vtos %v193
      %v195 = vstv %s194
      %196 = vst [vmem:[#allocation10] sm:$0x1] %v195
    $region25: #{tpu_custom_call.1} parent=1 // pred_fallthru
      _
    // Predicated region
    $region26: #{tpu_custom_call.1} parent=1 // pred_check
      _
    $region27: #{tpu_custom_call.1} parent=1 // pred_check_branch
      %198 = sbr.rel (0) target = $region29
    $region28: #{tpu_custom_call.1} parent=1 // pred_region
      %s200 = ssub.s32 16, 16
      %201 = vsyncadd [#allocation6], %s200
      %s203 = sshll.u32 [#allocation9], 4
      %s204 = int_to_ptr.vmem [resolvable:$true] %s203
      %206 = dma.vmem_to_hbm [thread:$0]  %s204, 16, %s2, [#allocation6]
    $region29: #{tpu_custom_call.1} parent=1 // pred_fallthru
      _
    // Predicated region
    $region30: #{tpu_custom_call.1} parent=1 // pred_check
      _
    $region31: #{tpu_custom_call.1} parent=1 // pred_check_branch
      %208 = sbr.rel (0) target = $region33
    $region32: #{tpu_custom_call.1} parent=1 // pred_region
      %s210 = ssub.s32 16, 16
      %211 = vsyncadd [#allocation11], %s210
      %s213 = sshll.u32 [#allocation10], 4
      %s214 = int_to_ptr.vmem [resolvable:$true] %s213
      %216 = dma.vmem_to_hbm [thread:$0]  %s214, 16, %s3, [#allocation11]
    $region33: #{tpu_custom_call.1} parent=1 // pred_fallthru
      _
    // Predicated region
    $region34: #{tpu_custom_call.1} parent=1 // pred_check
      _
    $region35: #{tpu_custom_call.1} parent=1 // pred_check_branch
      %218 = sbr.rel (0) target = $region37
    $region36: #{tpu_custom_call.1} parent=1 // pred_region
      %219 = dma.done [#allocation6], 16
    $region37: #{tpu_custom_call.1} parent=1 // pred_fallthru
      _
    // Predicated region
    $region38: #{tpu_custom_call.1} parent=1 // pred_check
      _
    $region39: #{tpu_custom_call.1} parent=1 // pred_check_branch
      %221 = sbr.rel (0) target = $region41
    $region40: #{tpu_custom_call.1} parent=1 // pred_region
      %222 = dma.done [#allocation11], 16
    $region41: #{tpu_custom_call.1} parent=1 // pred_fallthru
      _
    %223 = vsyncpa [#allocation5], 1
    %224 = vsyncpa [#allocation8], 1
    %225 = vsyncpa [#allocation6], 1
    %226 = vsyncpa [#allocation11], 1

</llo_original>
